<compile_context>
chip_gen: v5e
topology: v5e:2x2
jax: 0.10.0
libtpu: 0.0.40
codegen_flags: <defaults>
</compile_context>

<pallas_src>
import jax
import jax.numpy as jnp
from jax.experimental import pallas as pl
from jax.experimental.pallas import tpu as pltpu

LANE = 128


def _round_up(a, b):
    return (a + b - 1) // b * b


def _pick_row_tile(n_pad, cap):
    # Largest power-of-two tile <= cap that divides n_pad and leaves >= 2 row
    # tiles, so the "parallel" grid axis can be split across both TensorCores
    # on v7x megacore.
    for cand in (512, 256, 128, 64, 32, 16, 8):
        if cand <= cap and n_pad % cand == 0 and n_pad // cand >= 2:
            return cand
    return 8


# ----------------------------------------------------------------------------
# Fused kernel: out = (A_hat @ X) @ W_fold + b_fold
# Grid = (row tiles [parallel], K reduction tiles [arbitrary]).
# acc (row_tile, f) f32 scratch accumulates A_hat @ X; the small W_fold matmul
# and the bias add run once per row tile at the last K step.
# ----------------------------------------------------------------------------
def gcn_fused_kernel(a_ref, x_ref, w_ref, b_ref, o_ref, acc_ref):
    k = pl.program_id(1)

    @pl.when(k == 0)
    def _():
        acc_ref[...] = jnp.zeros_like(acc_ref)

    # acc += A_tile (bf16) @ X_tile (bf16), f32 accumulate on the MXU.
    acc_ref[...] += jnp.dot(
        a_ref[...], x_ref[...], preferred_element_type=jnp.float32
    )

    @pl.when(k == pl.num_programs(1) - 1)
    def _():
        # (A_hat @ X) @ W_fold + b_fold — W applied once per row tile (f32,
        # tiny and resident, so no extra bf16 rounding on the accumulator).
        o_ref[...] = (
            jnp.dot(acc_ref[...], w_ref[...], preferred_element_type=jnp.float32)
            + b_ref[...]
        ).astype(o_ref.dtype)


# ----------------------------------------------------------------------------
# Wrapper: fold params, pad to lane/tile multiples, launch the fused kernel.
# ----------------------------------------------------------------------------
def gcn_forward(a_hat, x, w1, b1, w2, b2, *, row_tile=512, k_tile=1024):
    n, f = x.shape
    out_channels = w2.shape[1]
    out_pad = _round_up(max(out_channels, LANE), LANE)  # lane-dense output slab

    # Algebraic fold (valid: no activation between conv1 and lin).
    w_fold = (w1 @ w2).astype(jnp.float32)          # [F, out]
    b_fold = (b1 @ w2 + b2).astype(jnp.float32)     # [1, out]
    w_p = jnp.zeros((f, out_pad), jnp.float32).at[:, :out_channels].set(w_fold)
    b_p = jnp.zeros((1, out_pad), jnp.float32).at[:, :out_channels].set(b_fold)

    # Tile selection: K tile (lane dim of A_hat) as large as possible for long
    # contiguous DMA rows; n_pad is a multiple of k_tile (and of 128).
    k_tile = min(k_tile, _round_up(n, LANE))
    n_pad = _round_up(n, k_tile)
    row_tile = _pick_row_tile(n_pad, row_tile)

    # One-pass pad + cast to bf16 (halves the dominant A_hat / X HBM traffic).
    a_p = (
        jnp.zeros((n_pad, n_pad), jnp.bfloat16)
        .at[:n, :n]
        .set(a_hat.astype(jnp.bfloat16))
    )
    x_p = (
        jnp.zeros((n_pad, f), jnp.bfloat16)
        .at[:n, :]
        .set(x.astype(jnp.bfloat16))
    )

    grid = (n_pad // row_tile, n_pad // k_tile)

    out_padded = pl.pallas_call(
        gcn_fused_kernel,
        out_shape=jax.ShapeDtypeStruct((n_pad, out_pad), jnp.float32),
        grid_spec=pltpu.PrefetchScalarGridSpec(
            num_scalar_prefetch=0,
            grid=grid,
            in_specs=[
                pl.BlockSpec((row_tile, k_tile), lambda i, k: (i, k)),  # A_hat tile
                pl.BlockSpec((k_tile, f), lambda i, k: (k, 0)),         # X tile
                pl.BlockSpec((f, out_pad), lambda i, k: (0, 0)),        # W_fold (resident)
                pl.BlockSpec((1, out_pad), lambda i, k: (0, 0)),        # bias (resident)
            ],
            out_specs=pl.BlockSpec((row_tile, out_pad), lambda i, k: (i, 0)),
            scratch_shapes=[pltpu.VMEM((row_tile, f), jnp.float32)],
        ),
        compiler_params=pltpu.CompilerParams(
            dimension_semantics=("parallel", "arbitrary"),
            vmem_limit_bytes=48 * 1024 * 1024,  # safe on v7x (64 MiB physical)
        ),
    )(a_p, x_p, w_p, b_p)

    return out_padded[:n, :out_channels]


# ----------------------------------------------------------------------------
# Plain-JAX glue: normalized adjacency (matches PyG gcn_norm with
# add_remaining_self_loops: self-loops added only where missing).
# ----------------------------------------------------------------------------
def normalized_adjacency(edge_index, num_nodes):
    src = edge_index[0]
    dst = edge_index[1]
    a = jnp.zeros((num_nodes, num_nodes), jnp.float32)
    a = a.at[dst, src].add(1.0)                         # out[dst] += x[src]
    diag = jnp.diagonal(a)
    a = a + jnp.diag(jnp.where(diag > 0.0, 0.0, 1.0))   # only missing self-loops
    deg = a.sum(axis=1)
    dinv = jnp.where(deg > 0.0, jax.lax.rsqrt(deg), 0.0)
    return dinv[:, None] * a * dinv[None, :]


def xavier_uniform(key, shape):
    fan_in, fan_out = shape[0], shape[1]
    bound = jnp.sqrt(6.0 / (fan_in + fan_out))
    return jax.random.uniform(key, shape, jnp.float32, -bound, bound)


if __name__ == "__main__":
    in_channels = 32
    hidden = 16
    out_channels = 4
    num_nodes = 300
    num_edges = 1200

    key = jax.random.PRNGKey(0)
    k_x, k_e, k_w1, k_w2 = jax.random.split(key, 4)

    x = jax.random.normal(k_x, (num_nodes, in_channels), jnp.float32)
    edge_index = jax.random.randint(k_e, (2, num_edges), 0, num_nodes, jnp.int32)

    # Xavier-uniform weights, zero biases (matches the module's weights_init).
    w1 = xavier_uniform(k_w1, (in_channels, hidden))    # GCNConv weight
    b1 = jnp.zeros((1, hidden), jnp.float32)            # GCNConv bias
    w2 = xavier_uniform(k_w2, (hidden, out_channels))   # Linear weight (transposed)
    b2 = jnp.zeros((1, out_channels), jnp.float32)      # Linear bias

    a_hat = normalized_adjacency(edge_index, num_nodes)

    # Small tiles here on purpose so the test exercises the multi-K-tile
    # accumulation path (grid = (3, 3)); production defaults are 512/1024.
    out = gcn_forward(a_hat, x, w1, b1, w2, b2, row_tile=128, k_tile=128)
    out = jax.block_until_ready(out)

    # f32 reference of the original (unfolded) forward pass; tolerance covers
    # the bf16 cast of A_hat / X used on the MXU.
    ref = (a_hat @ (x @ w1) + b1) @ w2 + b2
    assert jnp.allclose(out, ref, atol=3e-2, rtol=3e-2), "mismatch vs reference"

    print("KERNEL_OK")
</pallas_src>

<mosaic_0001>
module attributes {stable_mosaic.version = 11 : i64} {
  func.func @gcn_fused_kernel(%arg0: i32, %arg1: i32, %arg2: memref<128x128xbf16, #tpu.memory_space<vmem>>, %arg3: memref<128x32xbf16, #tpu.memory_space<vmem>>, %arg4: memref<32x128xf32, #tpu.memory_space<vmem>>, %arg5: memref<1x128xf32, #tpu.memory_space<vmem>>, %arg6: memref<128x128xf32, #tpu.memory_space<vmem>>, %arg7: memref<128x32xf32, #tpu.memory_space<vmem>>) attributes {dimension_semantics = [#tpu.dimension_semantics<parallel>, #tpu.dimension_semantics<arbitrary>], iteration_bounds = array<i64: 3, 3>, scalar_prefetch = 0 : i64, scratch_operands = 1 : i64, tpu.core_type = #tpu.core_type<tc>, window_params = [{transform_indices = @transform_0, window_bounds = array<i64: 128, 128>}, {transform_indices = @transform_1, window_bounds = array<i64: 128, 32>}, {pipeline_mode = #tpu.pipeline_mode<synchronous>, transform_indices = @transform_2, window_bounds = array<i64: 32, 128>}, {pipeline_mode = #tpu.pipeline_mode<synchronous>, transform_indices = @transform_3, window_bounds = array<i64: 1, 128>}, {transform_indices = @transform_4, window_bounds = array<i64: 128, 128>}]} {
    %c0_i32 = arith.constant 0 : i32
    %0 = arith.cmpi eq, %arg1, %c0_i32 : i32
    %1 = arith.extui %0 : i1 to i32
    %c0_i32_0 = arith.constant 0 : i32
    %2 = arith.cmpi ne, %1, %c0_i32_0 : i32
    scf.if %2 {
      %cst_9 = arith.constant 0.000000e+00 : f32
      %12 = vector.broadcast %cst_9 : f32 to vector<128x32xf32>
      %c0_10 = arith.constant 0 : index
      %c0_11 = arith.constant 0 : index
      %13 = vector.load %arg7[%c0_10, %c0_11] : memref<128x32xf32, #tpu.memory_space<vmem>>, vector<128x32xf32>
      tpu.vector_store %arg7[%c0_10, %c0_11], %12 {strides = array<i32>} : memref<128x32xf32, #tpu.memory_space<vmem>>, vector<128x32xf32>,
    } else {
    }
    %c0 = arith.constant 0 : index
    %c0_1 = arith.constant 0 : index
    %3 = vector.load %arg7[%c0, %c0_1] : memref<128x32xf32, #tpu.memory_space<vmem>>, vector<128x32xf32>
    %c0_2 = arith.constant 0 : index
    %c0_3 = arith.constant 0 : index
    %4 = vector.load %arg2[%c0_2, %c0_3] : memref<128x128xbf16, #tpu.memory_space<vmem>>, vector<128x128xbf16>
    %c0_4 = arith.constant 0 : index
    %c0_5 = arith.constant 0 : index
    %5 = vector.load %arg3[%c0_4, %c0_5] : memref<128x32xbf16, #tpu.memory_space<vmem>>, vector<128x32xbf16>
    %cst = arith.constant dense<0.000000e+00> : vector<128x32xf32>
    %6 = tpu.matmul %4, %5, %cst {dimension_numbers = #tpu.dot_dimension_numbers<[1], [0], [0], [1], [0, 0, 1, 1], [], []>} : vector<128x128xbf16>, vector<128x32xbf16>, vector<128x32xf32> -> vector<128x32xf32>
    %7 = arith.addf %3, %6 : vector<128x32xf32>
    %c0_6 = arith.constant 0 : index
    %c0_7 = arith.constant 0 : index
    %8 = vector.load %arg7[%c0_6, %c0_7] : memref<128x32xf32, #tpu.memory_space<vmem>>, vector<128x32xf32>
    tpu.vector_store %arg7[%c0_6, %c0_7], %7 {strides = array<i32>} : memref<128x32xf32, #tpu.memory_space<vmem>>, vector<128x32xf32>,
    %c2_i32 = arith.constant 2 : i32
    %9 = arith.cmpi eq, %arg1, %c2_i32 : i32
    %10 = arith.extui %9 : i1 to i32
    %c0_i32_8 = arith.constant 0 : i32
    %11 = arith.cmpi ne, %10, %c0_i32_8 : i32
    scf.if %11 {
      %c0_9 = arith.constant 0 : index
      %c0_10 = arith.constant 0 : index
      %12 = vector.load %arg7[%c0_9, %c0_10] : memref<128x32xf32, #tpu.memory_space<vmem>>, vector<128x32xf32>
      %c0_11 = arith.constant 0 : index
      %c0_12 = arith.constant 0 : index
      %13 = vector.load %arg4[%c0_11, %c0_12] : memref<32x128xf32, #tpu.memory_space<vmem>>, vector<32x128xf32>
      %cst_13 = arith.constant dense<0.000000e+00> : vector<128x128xf32>
      %14 = tpu.matmul %12, %13, %cst_13 {dimension_numbers = #tpu.dot_dimension_numbers<[1], [0], [0], [1], [0, 0, 1, 1], [], []>} : vector<128x32xf32>, vector<32x128xf32>, vector<128x128xf32> -> vector<128x128xf32>
      %c0_14 = arith.constant 0 : index
      %c0_15 = arith.constant 0 : index
      %15 = vector.load %arg5[%c0_14, %c0_15] : memref<1x128xf32, #tpu.memory_space<vmem>>, vector<1x128xf32>
      %16 = vector.broadcast %15 : vector<1x128xf32> to vector<128x128xf32>
      %17 = arith.addf %14, %16 : vector<128x128xf32>
      %c0_16 = arith.constant 0 : index
      %c0_17 = arith.constant 0 : index
      %18 = vector.load %arg6[%c0_16, %c0_17] : memref<128x128xf32, #tpu.memory_space<vmem>>, vector<128x128xf32>
      tpu.vector_store %arg6[%c0_16, %c0_17], %17 {strides = array<i32>} : memref<128x128xf32, #tpu.memory_space<vmem>>, vector<128x128xf32>,
    } else {
    }
    return
  }
  func.func @transform_0(%arg0: i32, %arg1: i32) -> (i32, i32) {
    %c0_i32 = arith.constant 0 : i32
    return %arg0, %arg1 : i32, i32
  }
  func.func @transform_1(%arg0: i32, %arg1: i32) -> (i32, i32) {
    %c0_i32 = arith.constant 0 : i32
    %c0_i32_0 = arith.constant 0 : i32
    return %arg1, %c0_i32 : i32, i32
  }
  func.func @transform_2(%arg0: i32, %arg1: i32) -> (i32, i32) {
    %c0_i32 = arith.constant 0 : i32
    %c0_i32_0 = arith.constant 0 : i32
    %c0_i32_1 = arith.constant 0 : i32
    return %c0_i32, %c0_i32_0 : i32, i32
  }
  func.func @transform_3(%arg0: i32, %arg1: i32) -> (i32, i32) {
    %c0_i32 = arith.constant 0 : i32
    %c0_i32_0 = arith.constant 0 : i32
    %c0_i32_1 = arith.constant 0 : i32
    return %c0_i32, %c0_i32_0 : i32, i32
  }
  func.func @transform_4(%arg0: i32, %arg1: i32) -> (i32, i32) {
    %c0_i32 = arith.constant 0 : i32
    %c0_i32_0 = arith.constant 0 : i32
    return %arg0, %c0_i32 : i32, i32
  }
}

</mosaic_0001>

<llo_original>
// kernel: tpu_custom_call.1
$region0: #{tpu_custom_call.1}
  #allocation0 [shape = 'u32[]', space=smem, size = 0x4, offset = 0x4, fixed_abs, tag = 'smem constant byte address 0x4 - core index']
  #allocation1 [shape = 'u32[72,128]{1,0:T(1,128)}', space=vmem, size = 0x9000, scoped, tag = 'internal scratch']
  #allocation2 [shape = 'f32[128,32]{1,0:T(8,128)}', space=vmem, size = 0x10000, scoped, tag = 'scratch operand']
  %s0 = inlined_call_operand.hbm [shape: bf16[384,384], index: 0, kind: input, shape index: {}]
  %s1 = inlined_call_operand.vmem [shape: bf16[384,32], index: 1, kind: input, shape index: {}]
  %s2 = inlined_call_operand.vmem [shape: f32[32,128], index: 2, kind: input, shape index: {}]
  %s3 = inlined_call_operand.vmem [shape: f32[1,128], index: 3, kind: input, shape index: {}]
  %s4 = inlined_call_operand.hbm [shape: f32[384,128], index: 4, kind: output, shape index: {}]
  %s5 = sld [smem:[#allocation0]]
  $region61: #{tpu_custom_call.1} parent=0
    _
  %s7 = ssub.s32 1, %s5
  %s8 = scalar_select 0, %s7, %s5
  $region1: #{tpu_custom_call.1} parent=0
    #allocation3 [shape = 'u8[65536]{0}', space=vmem, size = 0x10000, scoped, tag = 'input window, operand 0']
    #allocation4 [shape = 's32[2]{0}', space=sflag, size = 0x8, scoped, tag = 'scoped memory for tpu_custom_call.1']
    #allocation5 [shape = 's32[2]{0}', space=sflag, size = 0x8, scoped, tag = 'scoped memory for tpu_custom_call.1']
    #allocation6 [shape = 'u8[131072]{0}', space=vmem, size = 0x20000, scoped, tag = 'output window, operand 0']
    %9 = vsyncpa [#allocation4], 0
    %s10 = scalar_lea.sflag [#allocation4], 1
    %11 = vsyncpa %s10, 0
    %12 = vsyncpa [#allocation5], 0
    %s13 = scalar_lea.sflag [#allocation5], 1
    %14 = vsyncpa %s13, 0
    loop: start=0, step=1, limit=11
    $region2: #{tpu_custom_call.1} parent=1 // loop_pre_header
      _
    $region3: #{tpu_custom_call.1} parent=1 // loop_header
      %s16 = sphi 0, %s20
      %p17 = scmp.ge.s32.totalorder %s16, 11
      %s23 = sphi 0, %s35
      %s24 = sphi 0, %s31
      %s25 = sphi 0, %s23
      %s26 = sphi 0, %s24
      %s27 = sphi 0, %s25
      %s28 = sphi 0, %s26
      %s40 = sphi 0, %s42
      %s43 = sphi 0, %s40
      %s44 = sphi 0, %s43
      %s60 = sphi 0, %s44
      %s66 = sphi 0, %s68
      %s69 = sphi 0, %s66
      %s70 = sphi 0, %s69
      %s86 = sphi 0, %s70
      %s90 = sphi 0, %s90
      %s92 = sphi 0, %s90
      %s93 = sphi 0, %s92
      %s107 = sphi 0, %s93
      %s111 = sphi 0, %s111
      %s113 = sphi 0, %s111
      %s114 = sphi 0, %s113
      %s128 = sphi 0, %s114
      %s134 = sphi 0, %s136
      %s137 = sphi 0, %s134
      %s138 = sphi 0, %s137
      %s154 = sphi 0, %s138
    $region4: #{tpu_custom_call.1} parent=1 // loop_header_branch
      %19 = sbr.rel (%p17) target = $region8
    $region5: #{tpu_custom_call.1} parent=1 // loop_body
      %s21 = ssub.s32 %s16, 1
      %s22 = ssub.s32 %s16, 2
      %s29 = sadd.s32 1, %s24
      %p30 = scmp.ge.s32.totalorder %s29, 3
      %s31 = scalar_select %p30, 0, %s29
      %s32 = sadd.s32 1, %s23
      %s33 = scalar_select %p30, %s32, %s23
      %p34 = scmp.ge.s32.totalorder %s33, 3
      %s35 = scalar_select %p34, 0, %s33
      %s36 = ssub.s32 %s23, %s35
      %s37 = ssub.s32 %s24, %s31
      %s38 = sor.u32 %s36, %s37
      %p39 = scmp.eq.s32.totalorder %s38, 0
      %s41 = sadd.s32 %s40, 1
      %s42 = scalar_select %p39, %s40, %s41
      %p45 = pneg %p39
      %p46 = scmp.eq.s32.totalorder %s16, 8
      %p47 = por %p45, %p46
      %p48 = scmp.ne.s32.totalorder %s40, %s43
      %p49 = scmp.eq.s32.totalorder %s16, 0
      %p50 = por %p48, %p49
      %p51 = scmp.ne.s32.totalorder %s40, %s43
      %p52 = scmp.eq.s32.totalorder %s21, 8
      %p53 = por %p51, %p52
      %p54 = scmp.ne.s32.totalorder %s43, %s44
      %p55 = scmp.eq.s32.totalorder %s21, 0
      %p56 = por %p54, %p55
      %p57 = scmp.ne.s32.totalorder %s43, %s44
      %p58 = scmp.eq.s32.totalorder %s22, 8
      %p59 = por %p57, %p58
      %p61 = scmp.ne.s32.totalorder %s44, %s60
      %p62 = scmp.eq.s32.totalorder %s22, 0
      %p63 = por %p61, %p62
      %s64 = ssub.s32 %s24, %s31
      %p65 = scmp.eq.s32.totalorder %s64, 0
      %s67 = sadd.s32 %s66, 1
      %s68 = scalar_select %p65, %s66, %s67
      %p71 = pneg %p65
      %p72 = scmp.eq.s32.totalorder %s16, 8
      %p73 = por %p71, %p72
      %p74 = scmp.ne.s32.totalorder %s66, %s69
      %p75 = scmp.eq.s32.totalorder %s16, 0
      %p76 = por %p74, %p75
      %p77 = scmp.ne.s32.totalorder %s66, %s69
      %p78 = scmp.eq.s32.totalorder %s21, 8
      %p79 = por %p77, %p78
      %p80 = scmp.ne.s32.totalorder %s69, %s70
      %p81 = scmp.eq.s32.totalorder %s21, 0
      %p82 = por %p80, %p81
      %p83 = scmp.ne.s32.totalorder %s69, %s70
      %p84 = scmp.eq.s32.totalorder %s22, 8
      %p85 = por %p83, %p84
      %p87 = scmp.ne.s32.totalorder %s70, %s86
      %p88 = scmp.eq.s32.totalorder %s22, 0
      %p89 = por %p87, %p88
      %s91 = sadd.s32 %s90, 1
      %p94 = scmp.eq.s32.totalorder %s16, 8
      %p95 = scmp.ne.s32.totalorder %s90, %s92
      %p96 = scmp.eq.s32.totalorder %s16, 0
      %p97 = por %p95, %p96
      %p98 = scmp.ne.s32.totalorder %s90, %s92
      %p99 = scmp.eq.s32.totalorder %s21, 8
      %p100 = por %p98, %p99
      %p101 = scmp.ne.s32.totalorder %s92, %s93
      %p102 = scmp.eq.s32.totalorder %s21, 0
      %p103 = por %p101, %p102
      %p104 = scmp.ne.s32.totalorder %s92, %s93
      %p105 = scmp.eq.s32.totalorder %s22, 8
      %p106 = por %p104, %p105
      %p108 = scmp.ne.s32.totalorder %s93, %s107
      %p109 = scmp.eq.s32.totalorder %s22, 0
      %p110 = por %p108, %p109
      %s112 = sadd.s32 %s111, 1
      %p115 = scmp.eq.s32.totalorder %s16, 8
      %p116 = scmp.ne.s32.totalorder %s111, %s113
      %p117 = scmp.eq.s32.totalorder %s16, 0
      %p118 = por %p116, %p117
      %p119 = scmp.ne.s32.totalorder %s111, %s113
      %p120 = scmp.eq.s32.totalorder %s21, 8
      %p121 = por %p119, %p120
      %p122 = scmp.ne.s32.totalorder %s113, %s114
      %p123 = scmp.eq.s32.totalorder %s21, 0
      %p124 = por %p122, %p123
      %p125 = scmp.ne.s32.totalorder %s113, %s114
      %p126 = scmp.eq.s32.totalorder %s22, 8
      %p127 = por %p125, %p126
      %p129 = scmp.ne.s32.totalorder %s114, %s128
      %p130 = scmp.eq.s32.totalorder %s22, 0
      %p131 = por %p129, %p130
      %s132 = ssub.s32 %s23, %s35
      %p133 = scmp.eq.s32.totalorder %s132, 0
      %s135 = sadd.s32 %s134, 1
      %s136 = scalar_select %p133, %s134, %s135
      %p139 = pneg %p133
      %p140 = scmp.eq.s32.totalorder %s16, 8
      %p141 = por %p139, %p140
      %p142 = scmp.ne.s32.totalorder %s134, %s137
      %p143 = scmp.eq.s32.totalorder %s16, 0
      %p144 = por %p142, %p143
      %p145 = scmp.ne.s32.totalorder %s134, %s137
      %p146 = scmp.eq.s32.totalorder %s21, 8
      %p147 = por %p145, %p146
      %p148 = scmp.ne.s32.totalorder %s137, %s138
      %p149 = scmp.eq.s32.totalorder %s21, 0
      %p150 = por %p148, %p149
      %p151 = scmp.ne.s32.totalorder %s137, %s138
      %p152 = scmp.eq.s32.totalorder %s22, 8
      %p153 = por %p151, %p152
      %p155 = scmp.ne.s32.totalorder %s138, %s154
      %p156 = scmp.eq.s32.totalorder %s22, 0
      %p157 = por %p155, %p156
      %p158 = scmp.le.s32.totalorder 1, %s16
      %p159 = scmp.lt.s32.totalorder %s16, 10
      %p160 = pnand %p158, %p159
      %p161 = pneg %p160
      // Predicated region
      $region9: #{tpu_custom_call.1} parent=5 // pred_check
        _
      $region10: #{tpu_custom_call.1} parent=5 // pred_check_branch
        %163 = sbr.rel (%p160) target = $region12
      $region11: #{tpu_custom_call.1} parent=5 // pred_region
        %s164 = ssub.s32 %s16, 1
        // Predicated region
        $region13: #{tpu_custom_call.1} parent=11 // pred_check
          %p165 = pneg %p103
        $region14: #{tpu_custom_call.1} parent=11 // pred_check_branch
          %167 = sbr.rel (%p165) target = $region16
        $region15: #{tpu_custom_call.1} parent=11 // pred_region
          _
        $region16: #{tpu_custom_call.1} parent=11 // pred_fallthru
          _
        // Predicated region
        $region17: #{tpu_custom_call.1} parent=11 // pred_check
          %p168 = pneg %p124
        $region18: #{tpu_custom_call.1} parent=11 // pred_check_branch
          %170 = sbr.rel (%p168) target = $region20
        $region19: #{tpu_custom_call.1} parent=11 // pred_region
          _
        $region20: #{tpu_custom_call.1} parent=11 // pred_fallthru
          _
      $region12: #{tpu_custom_call.1} parent=5 // pred_fallthru
        _
      %p171 = scmp.lt.s32.totalorder %s16, 9
      // Predicated region
      $region21: #{tpu_custom_call.1} parent=5 // pred_check
        %p172 = pneg %p171
      $region22: #{tpu_custom_call.1} parent=5 // pred_check_branch
        %174 = sbr.rel (%p172) target = $region24
      $region23: #{tpu_custom_call.1} parent=5 // pred_region
        // Predicated region
        $region25: #{tpu_custom_call.1} parent=23 // pred_check
          %p175 = pneg %p50
        $region26: #{tpu_custom_call.1} parent=23 // pred_check_branch
          %177 = sbr.rel (%p175) target = $region28
        $region27: #{tpu_custom_call.1} parent=23 // pred_region
          %s178 = sand.u32 %s40, 1
          %s179 = scalar_lea.sflag [#allocation4], %s178
          %s180 = sand.u32 %s40, 1
          %s181 = smul.addr %s180, 64
          %s182 = scalar_lea.vmem [#allocation3], %s181
          %s183 = smul.u32 16, %s23
          %185 = vsyncadd %s179, 0
          %s186 = smul.addr %s183, 3
          %s187 = sadd.s32 %s24, %s186
          %s188 = smul.addr %s187, 4
          %s189 = scalar_lea.hbm %s0, %s188
          %s190 = sshll.u32 %s189, 4
          %s191 = int_to_ptr.hbm [resolvable:$true] %s190
          %s192 = sshll.u32 %s182, 4
          %s193 = int_to_ptr.vmem [resolvable:$true] %s192
          %198 = dma.hbm_to_vmem [thread:$0]  %s191, 1024, %s193, %s179, 192, 64, 4
        $region28: #{tpu_custom_call.1} parent=23 // pred_fallthru
          _
        // Predicated region
        $region29: #{tpu_custom_call.1} parent=23 // pred_check
          %p199 = pneg %p76
        $region30: #{tpu_custom_call.1} parent=23 // pred_check_branch
          %201 = sbr.rel (%p199) target = $region32
        $region31: #{tpu_custom_call.1} parent=23 // pred_region
          %s202 = smul.u32 16, %s24
          %p203 = scmp.lt.s32.totalorder %s202, 47
          %s204 = scalar_select %p203, %s202, 47
          %s205 = smul.addr %s204, 4
          %s206 = scalar_lea.vmem %s1, %s205
          %s207 = smul.u32 16, %s24
        $region32: #{tpu_custom_call.1} parent=23 // pred_fallthru
          _
      $region24: #{tpu_custom_call.1} parent=5 // pred_fallthru
        _
      %p208 = scmp.le.s32.totalorder 1, %s16
      %p209 = scmp.lt.s32.totalorder %s16, 10
      %p210 = pnand %p208, %p209
      %p211 = pneg %p210
      // Predicated region
      $region33: #{tpu_custom_call.1} parent=5 // pred_check
        _
      $region34: #{tpu_custom_call.1} parent=5 // pred_check_branch
        %213 = sbr.rel (%p210) target = $region36
      $region35: #{tpu_custom_call.1} parent=5 // pred_region
        %s214 = ssub.s32 %s16, 1
        %s215 = sand.u32 %s43, 1
        %s216 = scalar_lea.sflag [#allocation4], %s215
        %s217 = sand.u32 %s43, 1
        %s218 = smul.addr %s217, 64
        %s219 = scalar_lea.vmem [#allocation3], %s218
        // Predicated region
        $region37: #{tpu_custom_call.1} parent=35 // pred_check
          %p220 = pneg %p56
        $region38: #{tpu_custom_call.1} parent=35 // pred_check_branch
          %222 = sbr.rel (%p220) target = $region40
        $region39: #{tpu_custom_call.1} parent=35 // pred_region
          %224 = dma.done %s216, 1024
        $region40: #{tpu_custom_call.1} parent=35 // pred_fallthru
          _
        %s225 = sand.u32 %s43, 1
        %s226 = scalar_lea.sflag [#allocation4], %s225
        %s227 = sand.u32 %s43, 1
        %s228 = smul.addr %s227, 64
        %s229 = scalar_lea.vmem [#allocation3], %s228
        %p230 = pneg %p56
        %p231 = pneg %p53
        %s232 = smul.u32 16, %s26
        %p233 = scmp.lt.s32.totalorder %s232, 47
        %s234 = scalar_select %p233, %s232, 47
        %s235 = smul.addr %s234, 4
        %s236 = scalar_lea.vmem %s1, %s235
        %p237 = pneg %p82
        %p238 = pneg %p79
        %p239 = pneg %p103
        %p240 = pneg %p100
        %p241 = pneg %p124
        %p242 = pneg %p121
        %p243 = pneg %p150
        %p244 = pneg %p147
        %s245 = sand.u32 %s137, 1
        %s246 = scalar_lea.sflag [#allocation5], %s245
        %s247 = sand.u32 %s137, 1
        %s248 = smul.addr %s247, 128
        %s249 = scalar_lea.vmem [#allocation6], %s248
        %s250 = smul.u32 16, %s25
        %s251 = smul.u32 16, %s26
        %p252 = scmp.lt.s32.totalorder %s251, 47
        %s253 = scalar_select %p252, %s251, 47
        %s254 = smul.addr %s253, 4
        %s255 = scalar_lea.vmem %s1, %s254
        %s256 = smul.u32 16, %s26
        %s257 = smul.u32 16, %s25
        %p258 = scmp.eq.s32.totalorder %s26, 0
        // Predicated region
        $region41: #{tpu_custom_call.1} parent=35 // pred_check
          %p259 = pneg %p258
        $region42: #{tpu_custom_call.1} parent=35 // pred_check_branch
          %261 = sbr.rel (%p259) target = $region44
        $region43: #{tpu_custom_call.1} parent=35 // pred_region
          %vm262 = vcmask 261120
          %263 = vst.msk [vmem:[#allocation2] sm:$0xff] %vm262, 0.0
          %264 = vst.msk [vmem:[#allocation2 + $0x8] sm:$0xff] %vm262, 0.0
          %265 = vst.msk [vmem:[#allocation2 + $0x10] sm:$0xff] %vm262, 0.0
          %266 = vst.msk [vmem:[#allocation2 + $0x18] sm:$0xff] %vm262, 0.0
          %267 = vst.msk [vmem:[#allocation2 + $0x20] sm:$0xff] %vm262, 0.0
          %268 = vst.msk [vmem:[#allocation2 + $0x28] sm:$0xff] %vm262, 0.0
          %269 = vst.msk [vmem:[#allocation2 + $0x30] sm:$0xff] %vm262, 0.0
          %270 = vst.msk [vmem:[#allocation2 + $0x38] sm:$0xff] %vm262, 0.0
          %271 = vst.msk [vmem:[#allocation2 + $0x40] sm:$0xff] %vm262, 0.0
          %272 = vst.msk [vmem:[#allocation2 + $0x48] sm:$0xff] %vm262, 0.0
          %273 = vst.msk [vmem:[#allocation2 + $0x50] sm:$0xff] %vm262, 0.0
          %274 = vst.msk [vmem:[#allocation2 + $0x58] sm:$0xff] %vm262, 0.0
          %275 = vst.msk [vmem:[#allocation2 + $0x60] sm:$0xff] %vm262, 0.0
          %276 = vst.msk [vmem:[#allocation2 + $0x68] sm:$0xff] %vm262, 0.0
          %277 = vst.msk [vmem:[#allocation2 + $0x70] sm:$0xff] %vm262, 0.0
          %278 = vst.msk [vmem:[#allocation2 + $0x78] sm:$0xff] %vm262, 0.0
        $region44: #{tpu_custom_call.1} parent=35 // pred_fallthru
          _
        %v279 = vld [vmem:[#allocation2] sm:$0xff]
        %v280 = vld [vmem:[#allocation2 + $0x8] sm:$0xff]
        %v281 = vld [vmem:[#allocation2 + $0x10] sm:$0xff]
        %v282 = vld [vmem:[#allocation2 + $0x18] sm:$0xff]
        %v283 = vld [vmem:[#allocation2 + $0x20] sm:$0xff]
        %v284 = vld [vmem:[#allocation2 + $0x28] sm:$0xff]
        %v285 = vld [vmem:[#allocation2 + $0x30] sm:$0xff]
        %v286 = vld [vmem:[#allocation2 + $0x38] sm:$0xff]
        %v287 = vld [vmem:[#allocation2 + $0x40] sm:$0xff]
        %v288 = vld [vmem:[#allocation2 + $0x48] sm:$0xff]
        %v289 = vld [vmem:[#allocation2 + $0x50] sm:$0xff]
        %v290 = vld [vmem:[#allocation2 + $0x58] sm:$0xff]
        %v291 = vld [vmem:[#allocation2 + $0x60] sm:$0xff]
        %v292 = vld [vmem:[#allocation2 + $0x68] sm:$0xff]
        %v293 = vld [vmem:[#allocation2 + $0x70] sm:$0xff]
        %v294 = vld [vmem:[#allocation2 + $0x78] sm:$0xff]
        %v295 = vld [vmem:[%s219] sm:$0xf]
        %v296 = vld [vmem:[%s219 + $0x4] sm:$0xf]
        %v297 = vld [vmem:[%s219 + $0x8] sm:$0xf]
        %v298 = vld [vmem:[%s219 + $0xc] sm:$0xf]
        %v299 = vld [vmem:[%s219 + $0x10] sm:$0xf]
        %v300 = vld [vmem:[%s219 + $0x14] sm:$0xf]
        %v301 = vld [vmem:[%s219 + $0x18] sm:$0xf]
        %v302 = vld [vmem:[%s219 + $0x1c] sm:$0xf]
        %v303 = vld [vmem:[%s219 + $0x20] sm:$0xf]
        %v304 = vld [vmem:[%s219 + $0x24] sm:$0xf]
        %v305 = vld [vmem:[%s219 + $0x28] sm:$0xf]
        %v306 = vld [vmem:[%s219 + $0x2c] sm:$0xf]
        %v307 = vld [vmem:[%s219 + $0x30] sm:$0xf]
        %v308 = vld [vmem:[%s219 + $0x34] sm:$0xf]
        %v309 = vld [vmem:[%s219 + $0x38] sm:$0xf]
        %v310 = vld [vmem:[%s219 + $0x3c] sm:$0xf]
        %v311 = vld [vmem:[%s255] sm:$0xf]
        %v312 = vld [vmem:[%s255 + $0x4] sm:$0xf]
        %v313 = vld [vmem:[%s255 + $0x8] sm:$0xf]
        %v314 = vld [vmem:[%s255 + $0xc] sm:$0xf]
        %v315 = vld [vmem:[%s255 + $0x10] sm:$0xf]
        %v316 = vld [vmem:[%s255 + $0x14] sm:$0xf]
        %v317 = vld [vmem:[%s255 + $0x18] sm:$0xf]
        %v318 = vld [vmem:[%s255 + $0x1c] sm:$0xf]
        %v319 = vld [vmem:[%s255 + $0x20] sm:$0xf]
        %v320 = vld [vmem:[%s255 + $0x24] sm:$0xf]
        %v321 = vld [vmem:[%s255 + $0x28] sm:$0xf]
        %v322 = vld [vmem:[%s255 + $0x2c] sm:$0xf]
        %v323 = vld [vmem:[%s255 + $0x30] sm:$0xf]
        %v324 = vld [vmem:[%s255 + $0x34] sm:$0xf]
        %v325 = vld [vmem:[%s255 + $0x38] sm:$0xf]
        %v326 = vld [vmem:[%s255 + $0x3c] sm:$0xf]
        %v343 = vunpack.c.l.b16 %v295
        %v344 = vunpack.c.l.b16 %v296
        %v345 = vunpack.c.l.b16 %v297
        %v346 = vunpack.c.l.b16 %v298
        %v347 = vunpack.c.l.b16 %v299
        %v348 = vunpack.c.l.b16 %v300
        %v349 = vunpack.c.l.b16 %v301
        %v350 = vunpack.c.l.b16 %v302
        %v351 = vunpack.c.l.b16 %v303
        %v352 = vunpack.c.l.b16 %v304
        %v353 = vunpack.c.l.b16 %v305
        %v354 = vunpack.c.l.b16 %v306
        %v355 = vunpack.c.l.b16 %v307
        %v356 = vunpack.c.l.b16 %v308
        %v357 = vunpack.c.l.b16 %v309
        %v358 = vunpack.c.l.b16 %v310
        %v359 = vpack.c.b16 %v344, %v343
        %v360 = vpack.c.b16 %v346, %v345
        %v361 = vpack.c.b16 %v348, %v347
        %v362 = vpack.c.b16 %v350, %v349
        %v363 = vpack.c.b16 %v352, %v351
        %v364 = vpack.c.b16 %v354, %v353
        %v365 = vpack.c.b16 %v356, %v355
        %v366 = vpack.c.b16 %v358, %v357
        %v391 = vunpack.c.l.b16 %v311
        %v392 = vunpack.c.l.b16 %v312
        %v393 = vunpack.c.l.b16 %v313
        %v394 = vunpack.c.l.b16 %v314
        %v395 = vunpack.c.l.b16 %v315
        %v396 = vunpack.c.l.b16 %v316
        %v397 = vunpack.c.l.b16 %v317
        %v398 = vunpack.c.l.b16 %v318
        %v399 = vunpack.c.l.b16 %v319
        %v400 = vunpack.c.l.b16 %v320
        %v401 = vunpack.c.l.b16 %v321
        %v402 = vunpack.c.l.b16 %v322
        %v403 = vunpack.c.l.b16 %v323
        %v404 = vunpack.c.l.b16 %v324
        %v405 = vunpack.c.l.b16 %v325
        %v406 = vunpack.c.l.b16 %v326
        %v407 = vpack.c.b16 %v392, %v391
        %v408 = vpack.c.b16 %v394, %v393
        %v409 = vpack.c.b16 %v396, %v395
        %v410 = vpack.c.b16 %v398, %v397
        %v411 = vpack.c.b16 %v400, %v399
        %v412 = vpack.c.b16 %v402, %v401
        %v413 = vpack.c.b16 %v404, %v403
        %v414 = vpack.c.b16 %v406, %v405
        %423 = vmatpush.bf16.msra.mxu0 %v414
        %424 = vmatpush.bf16.msra.mxu0 %v413
        %425 = vmatpush.bf16.msra.mxu0 %v412
        %426 = vmatpush.bf16.msra.mxu0 %v411
        %427 = vmatpush.bf16.msra.mxu0 %v410
        %428 = vmatpush.bf16.msra.mxu0 %v409
        %429 = vmatpush.bf16.msra.mxu0 %v408
        %430 = vmatpush.bf16.msra.mxu0 %v407
        %431 = vmatmul.bf16.gmra.mxu0 %v359
        %v432 = vpop.f32.mrf.mxu0
        %v433 = vadd.f32 0.0, %v432
        %v434 = vpop.f32.mrf.mxu0
        %v435 = vadd.f32 0.0, %v434
        %436 = vmatmul.bf16.gmra.mxu0 %v360
        %v437 = vpop.f32.mrf.mxu0
        %v438 = vadd.f32 0.0, %v437
        %v439 = vpop.f32.mrf.mxu0
        %v440 = vadd.f32 0.0, %v439
        %441 = vmatmul.bf16.gmra.mxu0 %v361
        %v442 = vpop.f32.mrf.mxu0
        %v443 = vadd.f32 0.0, %v442
        %v444 = vpop.f32.mrf.mxu0
        %v445 = vadd.f32 0.0, %v444
        %446 = vmatmul.bf16.gmra.mxu0 %v362
        %v447 = vpop.f32.mrf.mxu0
        %v448 = vadd.f32 0.0, %v447
        %v449 = vpop.f32.mrf.mxu0
        %v450 = vadd.f32 0.0, %v449
        %451 = vmatmul.bf16.gmra.mxu0 %v363
        %v452 = vpop.f32.mrf.mxu0
        %v453 = vadd.f32 0.0, %v452
        %v454 = vpop.f32.mrf.mxu0
        %v455 = vadd.f32 0.0, %v454
        %456 = vmatmul.bf16.gmra.mxu0 %v364
        %v457 = vpop.f32.mrf.mxu0
        %v458 = vadd.f32 0.0, %v457
        %v459 = vpop.f32.mrf.mxu0
        %v460 = vadd.f32 0.0, %v459
        %461 = vmatmul.bf16.gmra.mxu0 %v365
        %v462 = vpop.f32.mrf.mxu0
        %v463 = vadd.f32 0.0, %v462
        %v464 = vpop.f32.mrf.mxu0
        %v465 = vadd.f32 0.0, %v464
        %466 = vmatmul.bf16.gmra.mxu0 %v366
        %v467 = vpop.f32.mrf.mxu0
        %v468 = vadd.f32 0.0, %v467
        %v469 = vpop.f32.mrf.mxu0
        %v470 = vadd.f32 0.0, %v469
        %471 = vdwg.mxu0
        %v472 = vadd.f32 %v279, %v433
        %v473 = vadd.f32 %v280, %v435
        %v474 = vadd.f32 %v281, %v438
        %v475 = vadd.f32 %v282, %v440
        %v476 = vadd.f32 %v283, %v443
        %v477 = vadd.f32 %v284, %v445
        %v478 = vadd.f32 %v285, %v448
        %v479 = vadd.f32 %v286, %v450
        %v480 = vadd.f32 %v287, %v453
        %v481 = vadd.f32 %v288, %v455
        %v482 = vadd.f32 %v289, %v458
        %v483 = vadd.f32 %v290, %v460
        %v484 = vadd.f32 %v291, %v463
        %v485 = vadd.f32 %v292, %v465
        %v486 = vadd.f32 %v293, %v468
        %v487 = vadd.f32 %v294, %v470
        %vm488 = vcmask 261120
        %489 = vst.msk [vmem:[#allocation2] sm:$0xff] %vm488, %v472
        %490 = vst.msk [vmem:[#allocation2 + $0x8] sm:$0xff] %vm488, %v473
        %491 = vst.msk [vmem:[#allocation2 + $0x10] sm:$0xff] %vm488, %v474
        %492 = vst.msk [vmem:[#allocation2 + $0x18] sm:$0xff] %vm488, %v475
        %493 = vst.msk [vmem:[#allocation2 + $0x20] sm:$0xff] %vm488, %v476
        %494 = vst.msk [vmem:[#allocation2 + $0x28] sm:$0xff] %vm488, %v477
        %495 = vst.msk [vmem:[#allocation2 + $0x30] sm:$0xff] %vm488, %v478
        %496 = vst.msk [vmem:[#allocation2 + $0x38] sm:$0xff] %vm488, %v479
        %497 = vst.msk [vmem:[#allocation2 + $0x40] sm:$0xff] %vm488, %v480
        %498 = vst.msk [vmem:[#allocation2 + $0x48] sm:$0xff] %vm488, %v481
        %499 = vst.msk [vmem:[#allocation2 + $0x50] sm:$0xff] %vm488, %v482
        %500 = vst.msk [vmem:[#allocation2 + $0x58] sm:$0xff] %vm488, %v483
        %501 = vst.msk [vmem:[#allocation2 + $0x60] sm:$0xff] %vm488, %v484
        %502 = vst.msk [vmem:[#allocation2 + $0x68] sm:$0xff] %vm488, %v485
        %503 = vst.msk [vmem:[#allocation2 + $0x70] sm:$0xff] %vm488, %v486
        %504 = vst.msk [vmem:[#allocation2 + $0x78] sm:$0xff] %vm488, %v487
        %p505 = scmp.eq.s32.totalorder %s26, 2
        // Predicated region
        $region45: #{tpu_custom_call.1} parent=35 // pred_check
          %p506 = pneg %p505
        $region46: #{tpu_custom_call.1} parent=35 // pred_check_branch
          %508 = sbr.rel (%p506) target = $region48
        $region47: #{tpu_custom_call.1} parent=35 // pred_region
          %v509 = vld [vmem:[#allocation2] sm:$0xff]
          %v510 = vld [vmem:[#allocation2 + $0x8] sm:$0xff]
          %v511 = vld [vmem:[#allocation2 + $0x10] sm:$0xff]
          %v512 = vld [vmem:[#allocation2 + $0x18] sm:$0xff]
          %v513 = vld [vmem:[#allocation2 + $0x20] sm:$0xff]
          %v514 = vld [vmem:[#allocation2 + $0x28] sm:$0xff]
          %v515 = vld [vmem:[#allocation2 + $0x30] sm:$0xff]
          %v516 = vld [vmem:[#allocation2 + $0x38] sm:$0xff]
          %v517 = vld [vmem:[#allocation2 + $0x40] sm:$0xff]
          %v518 = vld [vmem:[#allocation2 + $0x48] sm:$0xff]
          %v519 = vld [vmem:[#allocation2 + $0x50] sm:$0xff]
          %v520 = vld [vmem:[#allocation2 + $0x58] sm:$0xff]
          %v521 = vld [vmem:[#allocation2 + $0x60] sm:$0xff]
          %v522 = vld [vmem:[#allocation2 + $0x68] sm:$0xff]
          %v523 = vld [vmem:[#allocation2 + $0x70] sm:$0xff]
          %v524 = vld [vmem:[#allocation2 + $0x78] sm:$0xff]
          %v525 = vld [vmem:[%s2] sm:$0xff]
          %v526 = vld [vmem:[%s2 + $0x8] sm:$0xff]
          %v527 = vld [vmem:[%s2 + $0x10] sm:$0xff]
          %v528 = vld [vmem:[%s2 + $0x18] sm:$0xff]
          %v529 = vld [vmem:[%s3] sm:$0x1]
          %v531 = vperm.slane %v529, 0
          %v534 = vsel %vm488, %v509, 0
          %v537 = vsel %vm488, %v510, 0
          %v540 = vsel %vm488, %v511, 0
          %v543 = vsel %vm488, %v512, 0
          %v546 = vsel %vm488, %v513, 0
          %v549 = vsel %vm488, %v514, 0
          %v552 = vsel %vm488, %v515, 0
          %v555 = vsel %vm488, %v516, 0
          %v558 = vsel %vm488, %v517, 0
          %v561 = vsel %vm488, %v518, 0
          %v564 = vsel %vm488, %v519, 0
          %v567 = vsel %vm488, %v520, 0
          %v570 = vsel %vm488, %v521, 0
          %v573 = vsel %vm488, %v522, 0
          %v576 = vsel %vm488, %v523, 0
          %v579 = vsel %vm488, %v524, 0
          %581 = vmatpush.msra.mxu0 0.0
          %582 = vmatpush.msra.mxu0 0.0
          %583 = vmatpush.msra.mxu0 0.0
          %584 = vmatpush.msra.mxu0 0.0
          %585 = vmatpush.msra.mxu0 0.0
          %586 = vmatpush.msra.mxu0 0.0
          %587 = vmatpush.msra.mxu0 0.0
          %588 = vmatpush.msra.mxu0 0.0
          %589 = vmatpush.msra.mxu0 0.0
          %590 = vmatpush.msra.mxu0 0.0
          %591 = vmatpush.msra.mxu0 0.0
          %592 = vmatpush.msra.mxu0 0.0
          %593 = vmatpush.msra.mxu0 %v528
          %594 = vmatpush.msra.mxu0 %v527
          %595 = vmatpush.msra.mxu0 %v526
          %596 = vmatpush.msra.mxu0 %v525
          %597 = vmatmul.f32.gmra.mxu0 %v534
          %v598 = vpop.f32.mrf.mxu0
          %v599 = vadd.f32 %v531, %v598
          %600 = vmatmul.f32.gmra.mxu0 %v537
          %v601 = vpop.f32.mrf.mxu0
          %v602 = vadd.f32 %v531, %v601
          %603 = vmatmul.f32.gmra.mxu0 %v540
          %v604 = vpop.f32.mrf.mxu0
          %v605 = vadd.f32 %v531, %v604
          %606 = vmatmul.f32.gmra.mxu0 %v543
          %v607 = vpop.f32.mrf.mxu0
          %v608 = vadd.f32 %v531, %v607
          %609 = vmatmul.f32.gmra.mxu0 %v546
          %v610 = vpop.f32.mrf.mxu0
          %v611 = vadd.f32 %v531, %v610
          %612 = vmatmul.f32.gmra.mxu0 %v549
          %v613 = vpop.f32.mrf.mxu0
          %v614 = vadd.f32 %v531, %v613
          %615 = vmatmul.f32.gmra.mxu0 %v552
          %v616 = vpop.f32.mrf.mxu0
          %v617 = vadd.f32 %v531, %v616
          %618 = vmatmul.f32.gmra.mxu0 %v555
          %v619 = vpop.f32.mrf.mxu0
          %v620 = vadd.f32 %v531, %v619
          %621 = vmatmul.f32.gmra.mxu0 %v558
          %v622 = vpop.f32.mrf.mxu0
          %v623 = vadd.f32 %v531, %v622
          %624 = vmatmul.f32.gmra.mxu0 %v561
          %v625 = vpop.f32.mrf.mxu0
          %v626 = vadd.f32 %v531, %v625
          %627 = vmatmul.f32.gmra.mxu0 %v564
          %v628 = vpop.f32.mrf.mxu0
          %v629 = vadd.f32 %v531, %v628
          %630 = vmatmul.f32.gmra.mxu0 %v567
          %v631 = vpop.f32.mrf.mxu0
          %v632 = vadd.f32 %v531, %v631
          %633 = vmatmul.f32.gmra.mxu0 %v570
          %v634 = vpop.f32.mrf.mxu0
          %v635 = vadd.f32 %v531, %v634
          %636 = vmatmul.f32.gmra.mxu0 %v573
          %v637 = vpop.f32.mrf.mxu0
          %v638 = vadd.f32 %v531, %v637
          %639 = vmatmul.f32.gmra.mxu0 %v576
          %v640 = vpop.f32.mrf.mxu0
          %v641 = vadd.f32 %v531, %v640
          %642 = vmatmul.f32.gmra.mxu0 %v579
          %v643 = vpop.f32.mrf.mxu0
          %v644 = vadd.f32 %v531, %v643
          %645 = vdwg.mxu0
          %646 = vst [vmem:[%s249] sm:$0xff] %v599
          %647 = vst [vmem:[%s249 + $0x8] sm:$0xff] %v602
          %648 = vst [vmem:[%s249 + $0x10] sm:$0xff] %v605
          %649 = vst [vmem:[%s249 + $0x18] sm:$0xff] %v608
          %650 = vst [vmem:[%s249 + $0x20] sm:$0xff] %v611
          %651 = vst [vmem:[%s249 + $0x28] sm:$0xff] %v614
          %652 = vst [vmem:[%s249 + $0x30] sm:$0xff] %v617
          %653 = vst [vmem:[%s249 + $0x38] sm:$0xff] %v620
          %654 = vst [vmem:[%s249 + $0x40] sm:$0xff] %v623
          %655 = vst [vmem:[%s249 + $0x48] sm:$0xff] %v626
          %656 = vst [vmem:[%s249 + $0x50] sm:$0xff] %v629
          %657 = vst [vmem:[%s249 + $0x58] sm:$0xff] %v632
          %658 = vst [vmem:[%s249 + $0x60] sm:$0xff] %v635
          %659 = vst [vmem:[%s249 + $0x68] sm:$0xff] %v638
          %660 = vst [vmem:[%s249 + $0x70] sm:$0xff] %v641
          %661 = vst [vmem:[%s249 + $0x78] sm:$0xff] %v644
        $region48: #{tpu_custom_call.1} parent=35 // pred_fallthru
          _
        %s662 = sand.u32 %s137, 1
        %s663 = scalar_lea.sflag [#allocation5], %s662
        %s664 = sand.u32 %s137, 1
        %s665 = smul.addr %s664, 128
        %s666 = scalar_lea.vmem [#allocation6], %s665
        // Predicated region
        $region49: #{tpu_custom_call.1} parent=35 // pred_check
          %p667 = pneg %p147
        $region50: #{tpu_custom_call.1} parent=35 // pred_check_branch
          %669 = sbr.rel (%p667) target = $region52
        $region51: #{tpu_custom_call.1} parent=35 // pred_region
          %s670 = smul.u32 16, %s25
          %672 = vsyncadd %s663, 0
          %s673 = smul.addr %s670, 8
          %s674 = scalar_lea.hbm %s4, %s673
          %s675 = sshll.u32 %s666, 4
          %s676 = int_to_ptr.vmem [resolvable:$true] %s675
          %s677 = sshll.u32 %s674, 4
          %s678 = int_to_ptr.hbm [resolvable:$true] %s677
          %683 = dma.vmem_to_hbm [thread:$0]  %s676, 2048, %s678, %s663, 128, 128, 8
        $region52: #{tpu_custom_call.1} parent=35 // pred_fallthru
          _
      $region36: #{tpu_custom_call.1} parent=5 // pred_fallthru
        _
      %p684 = scmp.le.s32.totalorder 2, %s16
      // Predicated region
      $region53: #{tpu_custom_call.1} parent=5 // pred_check
        %p685 = pneg %p684
      $region54: #{tpu_custom_call.1} parent=5 // pred_check_branch
        %687 = sbr.rel (%p685) target = $region56
      $region55: #{tpu_custom_call.1} parent=5 // pred_region
        %s688 = ssub.s32 %s16, 2
        // Predicated region
        $region57: #{tpu_custom_call.1} parent=55 // pred_check
          %p689 = pneg %p153
        $region58: #{tpu_custom_call.1} parent=55 // pred_check_branch
          %691 = sbr.rel (%p689) target = $region60
        $region59: #{tpu_custom_call.1} parent=55 // pred_region
          %s692 = sand.u32 %s138, 1
          %s693 = scalar_lea.sflag [#allocation5], %s692
          %s694 = sand.u32 %s138, 1
          %s695 = smul.addr %s694, 128
          %s696 = scalar_lea.vmem [#allocation6], %s695
          %698 = dma.done %s693, 2048
        $region60: #{tpu_custom_call.1} parent=55 // pred_fallthru
          _
      $region56: #{tpu_custom_call.1} parent=5 // pred_fallthru
        _
    $region6: #{tpu_custom_call.1} parent=1 // loop_footer
      %s20 = sadd.s32 1, %s16
    $region7: #{tpu_custom_call.1} parent=1 // loop_footer_branch
      %15 = sbr.rel target = $region3
    $region8: #{tpu_custom_call.1} parent=1 // loop_exit
      _
    %699 = vsyncpa [#allocation4], 1
    %s700 = scalar_lea.sflag [#allocation4], 1
    %701 = vsyncpa %s700, 1
    %702 = vsyncpa [#allocation5], 1
    %s703 = scalar_lea.sflag [#allocation5], 1
    %704 = vsyncpa %s703, 1

</llo_original>
